<compile_context>
chip_gen: v7x
topology: tpu7x:2x2x1
jax: 0.10.0
libtpu: 0.0.40
codegen_flags: <defaults>
</compile_context>

<pallas_src>
import jax
import jax.numpy as jnp
from jax.experimental import pallas as pl
from jax.experimental.pallas import tpu as pltpu

F_IN = 41      # raw input features (read as-is; MXU pads K internally)
H1 = 100
H2 = 50
H1P = 128      # padded hidden dims (zero-padding is exact through ReLU/dots)
H2P = 64


def _round_up(n, m):
    return ((n + m - 1) // m) * m


def _mlp_kernel(x_ref, w1_ref, b1_ref, w2_ref, b2_ref, w3_ref, b3_ref, o_ref):
    # Layer 1: cast the raw f32 x tile to bf16 in-kernel (no wrapper pad/cast pass).
    x_bf = x_ref[...].astype(jnp.bfloat16)
    h1 = jnp.dot(x_bf, w1_ref[...], preferred_element_type=jnp.float32)
    h1 = jnp.maximum(h1 + b1_ref[...], 0.0)                       # f32 epilogue
    # Layer 2.
    h2 = jnp.dot(h1.astype(jnp.bfloat16), w2_ref[...],
                 preferred_element_type=jnp.float32)
    h2 = jnp.maximum(h2 + b2_ref[...], 0.0)
    # Layer 3 (out dim = 1): contract w3 [1, H2P] against h2 [tb, H2P] on the feature
    # axis, producing a lane-dense [1, tb] row directly (q @ k.T dot_general pattern).
    # Avoids a masked single-lane [tb,1] store and a [tb,1]->[1,tb] relayout.
    out_row = jax.lax.dot_general(
        w3_ref[...], h2.astype(jnp.bfloat16),
        dimension_numbers=(((1,), (1,)), ((), ())),
        preferred_element_type=jnp.float32)                        # [1, tb]
    o_ref[...] = out_row + b3_ref[...]


def match_model_forward(x, w1, b1, w2, b2, w3, b3, *, block_b=4096):
    """Fused MLP forward (eval mode: dropout = identity).

    x: [B, 41] float32.  Weights are [in_features, out_features] (already transposed
    from PyTorch's [out, in]); biases are [1, out_features].  Returns [B, 1] float32.
    """
    B, F = x.shape
    assert F == F_IN, F
    assert block_b % 128 == 0, "block_b must be a multiple of 128"

    # Batch tile: exact single block for small batches, else block_b (the last block
    # may be partial; its unspecified rows are computed and then sliced away).
    tb = B if B <= block_b else block_b
    grid_b = pl.cdiv(B, tb)
    total = grid_b * tb

    # One-time tiny weight prep: zero-pad hidden dims, bf16 MXU streams, f32 biases.
    # Exactness: padded h1/h2 columns are ReLU(0 + 0) = 0, and the matching padded
    # w2 rows / w3 entries are 0, so padding contributes nothing.
    w1_p = jnp.pad(w1, ((0, 0), (0, H1P - H1))).astype(jnp.bfloat16)            # [41, 128]
    b1_p = jnp.pad(b1, ((0, 0), (0, H1P - H1))).astype(jnp.float32)             # [1, 128]
    w2_p = jnp.pad(w2, ((0, H1P - H1), (0, H2P - H2))).astype(jnp.bfloat16)     # [128, 64]
    b2_p = jnp.pad(b2, ((0, 0), (0, H2P - H2))).astype(jnp.float32)             # [1, 64]
    w3_p = jnp.pad(w3.reshape(1, H2), ((0, 0), (0, H2P - H2))).astype(jnp.bfloat16)  # [1, 64]
    b3_p = b3.reshape(1, 1).astype(jnp.float32)                                 # [1, 1]

    const = lambda shape: pl.BlockSpec(shape, lambda i: (0, 0))   # VMEM-resident

    flops = 2 * total * (F_IN * H1P + H1P * H2P + H2P)
    bytes_accessed = (B * F_IN * 4                                 # raw f32 x read
                      + w1_p.size * 2 + w2_p.size * 2 + w3_p.size * 2
                      + b1_p.size * 4 + b2_p.size * 4 + 4
                      + total * 4)                                 # lane-dense f32 out

    out = pl.pallas_call(
        _mlp_kernel,
        out_shape=jax.ShapeDtypeStruct((1, total), jnp.float32),
        grid=(grid_b,),
        in_specs=[
            pl.BlockSpec((tb, F_IN), lambda i: (i, 0)),   # x: raw f32, tiled on batch
            const((F_IN, H1P)),                           # w1 (resident)
            const((1, H1P)),                              # b1
            const((H1P, H2P)),                            # w2
            const((1, H2P)),                              # b2
            const((1, H2P)),                              # w3 row
            const((1, 1)),                                # b3
        ],
        out_specs=pl.BlockSpec((1, tb), lambda i: (0, i)),
        compiler_params=pltpu.CompilerParams(
            dimension_semantics=("parallel",),
            vmem_limit_bytes=48 * 1024 * 1024),
        cost_estimate=pl.CostEstimate(flops=flops, transcendentals=0,
                                      bytes_accessed=bytes_accessed),
    )(x, w1_p, b1_p, w2_p, b2_p, w3_p, b3_p)

    # Columns past B (partial last tile) are unspecified; slice them off here.
    return out[0, :B][:, None]


def init_params(key):
    """Deterministic init mimicking nn.Linear (uniform +/- 1/sqrt(fan_in)).

    Weights returned already transposed to [in_features, out_features];
    biases are [1, out_features].
    """
    def linear(key, fan_in, fan_out):
        kw, kb = jax.random.split(key)
        bound = 1.0 / (fan_in ** 0.5)
        w = jax.random.uniform(kw, (fan_in, fan_out), jnp.float32,
                               minval=-bound, maxval=bound)
        b = jax.random.uniform(kb, (1, fan_out), jnp.float32,
                               minval=-bound, maxval=bound)
        return w, b

    k1, k2, k3 = jax.random.split(key, 3)
    w1, b1 = linear(k1, F_IN, H1)
    w2, b2 = linear(k2, H1, H2)
    w3, b3 = linear(k3, H2, 1)
    return w1, b1, w2, b2, w3, b3


def reference_forward_f32(x, w1, b1, w2, b2, w3, b3):
    """Full-f32 reference matching the PyTorch MatchModel (eval mode)."""
    h1 = jnp.maximum(x @ w1 + b1, 0.0)
    h2 = jnp.maximum(h1 @ w2 + b2, 0.0)
    return h2 @ w3 + b3


def reference_forward_mirrored(x, w1, b1, w2, b2, w3, b3):
    """XLA reference mirroring the kernel's bf16-input / f32-accumulate math."""
    bf = jnp.bfloat16
    h1 = jnp.dot(x.astype(bf), w1.astype(bf), preferred_element_type=jnp.float32) + b1
    h1 = jnp.maximum(h1, 0.0)
    h2 = jnp.dot(h1.astype(bf), w2.astype(bf), preferred_element_type=jnp.float32) + b2
    h2 = jnp.maximum(h2, 0.0)
    return jnp.dot(h2.astype(bf), w3.astype(bf), preferred_element_type=jnp.float32) + b3


if __name__ == "__main__":
    key = jax.random.PRNGKey(0)
    kx1, kx2, kp = jax.random.split(key, 3)
    params = init_params(kp)

    # Case 1: multi-step batch grid with a partial last tile (B=300, tb=128 -> 3 steps).
    B1 = 300
    x1 = jax.random.normal(kx1, (B1, F_IN), dtype=jnp.float32)
    out1 = jax.block_until_ready(match_model_forward(x1, *params, block_b=128))
    assert out1.shape == (B1, 1), out1.shape
    ref1_m = reference_forward_mirrored(x1, *params)
    ref1_f = reference_forward_f32(x1, *params)
    err_m = float(jnp.max(jnp.abs(out1 - ref1_m)))
    err_f = float(jnp.max(jnp.abs(out1 - ref1_f)))
    assert jnp.allclose(out1, ref1_m, atol=2e-3, rtol=2e-3), f"bf16-mirrored max err {err_m}"
    assert jnp.allclose(out1, ref1_f, atol=5e-2, rtol=5e-2), f"f32 max err {err_f}"

    # Case 2: tiny batch, single exact tile, default (production) block_b.
    B2 = 20
    x2 = jax.random.normal(kx2, (B2, F_IN), dtype=jnp.float32)
    out2 = jax.block_until_ready(match_model_forward(x2, *params))
    assert out2.shape == (B2, 1), out2.shape
    ref2_m = reference_forward_mirrored(x2, *params)
    err2 = float(jnp.max(jnp.abs(out2 - ref2_m)))
    assert jnp.allclose(out2, ref2_m, atol=2e-3, rtol=2e-3), f"max err {err2}"

    print("KERNEL_OK")
</pallas_src>

<mosaic_0001>
module attributes {stable_mosaic.version = 11 : i64} {
  func.func @_mlp_kernel(%arg0: i32, %arg1: memref<128x41xf32, #tpu.memory_space<vmem>>, %arg2: memref<41x128xbf16, #tpu.memory_space<vmem>>, %arg3: memref<1x128xf32, #tpu.memory_space<vmem>>, %arg4: memref<128x64xbf16, #tpu.memory_space<vmem>>, %arg5: memref<1x64xf32, #tpu.memory_space<vmem>>, %arg6: memref<1x64xbf16, #tpu.memory_space<vmem>>, %arg7: memref<1x1xf32, #tpu.memory_space<vmem>>, %arg8: memref<1x128xf32, #tpu.memory_space<vmem>>) attributes {dimension_semantics = [#tpu.dimension_semantics<parallel>], iteration_bounds = array<i64: 3>, scalar_prefetch = 0 : i64, scratch_operands = 0 : i64, tpu.core_type = #tpu.core_type<tc>, window_params = [{transform_indices = @transform_0, window_bounds = array<i64: 128, 41>}, {pipeline_mode = #tpu.pipeline_mode<synchronous>, transform_indices = @transform_1, window_bounds = array<i64: 41, 128>}, {pipeline_mode = #tpu.pipeline_mode<synchronous>, transform_indices = @transform_2, window_bounds = array<i64: 1, 128>}, {pipeline_mode = #tpu.pipeline_mode<synchronous>, transform_indices = @transform_3, window_bounds = array<i64: 128, 64>}, {pipeline_mode = #tpu.pipeline_mode<synchronous>, transform_indices = @transform_4, window_bounds = array<i64: 1, 64>}, {pipeline_mode = #tpu.pipeline_mode<synchronous>, transform_indices = @transform_5, window_bounds = array<i64: 1, 64>}, {pipeline_mode = #tpu.pipeline_mode<synchronous>, transform_indices = @transform_6, window_bounds = array<i64: 1, 1>}, {transform_indices = @transform_7, window_bounds = array<i64: 1, 128>}]} {
    %c0 = arith.constant 0 : index
    %c0_0 = arith.constant 0 : index
    %0 = vector.load %arg1[%c0, %c0_0] : memref<128x41xf32, #tpu.memory_space<vmem>>, vector<128x41xf32>
    %1 = arith.truncf %0 : vector<128x41xf32> to vector<128x41xbf16>
    %c0_1 = arith.constant 0 : index
    %c0_2 = arith.constant 0 : index
    %2 = vector.load %arg2[%c0_1, %c0_2] : memref<41x128xbf16, #tpu.memory_space<vmem>>, vector<41x128xbf16>
    %cst = arith.constant dense<0.000000e+00> : vector<128x128xf32>
    %3 = tpu.matmul %1, %2, %cst {dimension_numbers = #tpu.dot_dimension_numbers<[1], [0], [0], [1], [0, 0, 1, 1], [], []>} : vector<128x41xbf16>, vector<41x128xbf16>, vector<128x128xf32> -> vector<128x128xf32>
    %c0_3 = arith.constant 0 : index
    %c0_4 = arith.constant 0 : index
    %4 = vector.load %arg3[%c0_3, %c0_4] : memref<1x128xf32, #tpu.memory_space<vmem>>, vector<1x128xf32>
    %5 = vector.broadcast %4 : vector<1x128xf32> to vector<128x128xf32>
    %6 = arith.addf %3, %5 : vector<128x128xf32>
    %cst_5 = arith.constant 0.000000e+00 : f32
    %7 = vector.broadcast %cst_5 : f32 to vector<128x128xf32>
    %8 = arith.maximumf %6, %7 : vector<128x128xf32>
    %9 = arith.truncf %8 : vector<128x128xf32> to vector<128x128xbf16>
    %c0_6 = arith.constant 0 : index
    %c0_7 = arith.constant 0 : index
    %10 = vector.load %arg4[%c0_6, %c0_7] : memref<128x64xbf16, #tpu.memory_space<vmem>>, vector<128x64xbf16>
    %cst_8 = arith.constant dense<0.000000e+00> : vector<128x64xf32>
    %11 = tpu.matmul %9, %10, %cst_8 {dimension_numbers = #tpu.dot_dimension_numbers<[1], [0], [0], [1], [0, 0, 1, 1], [], []>} : vector<128x128xbf16>, vector<128x64xbf16>, vector<128x64xf32> -> vector<128x64xf32>
    %c0_9 = arith.constant 0 : index
    %c0_10 = arith.constant 0 : index
    %12 = vector.load %arg5[%c0_9, %c0_10] : memref<1x64xf32, #tpu.memory_space<vmem>>, vector<1x64xf32>
    %13 = vector.broadcast %12 : vector<1x64xf32> to vector<128x64xf32>
    %14 = arith.addf %11, %13 : vector<128x64xf32>
    %cst_11 = arith.constant 0.000000e+00 : f32
    %15 = vector.broadcast %cst_11 : f32 to vector<128x64xf32>
    %16 = arith.maximumf %14, %15 : vector<128x64xf32>
    %c0_12 = arith.constant 0 : index
    %c0_13 = arith.constant 0 : index
    %17 = vector.load %arg6[%c0_12, %c0_13] : memref<1x64xbf16, #tpu.memory_space<vmem>>, vector<1x64xbf16>
    %18 = arith.truncf %16 : vector<128x64xf32> to vector<128x64xbf16>
    %cst_14 = arith.constant dense<0.000000e+00> : vector<1x128xf32>
    %19 = tpu.matmul %17, %18, %cst_14 {dimension_numbers = #tpu.dot_dimension_numbers<[1], [1], [0], [0], [0, 0, 1, 0], [], []>} : vector<1x64xbf16>, vector<128x64xbf16>, vector<1x128xf32> -> vector<1x128xf32>
    %c0_15 = arith.constant 0 : index
    %c0_16 = arith.constant 0 : index
    %20 = vector.load %arg7[%c0_15, %c0_16] : memref<1x1xf32, #tpu.memory_space<vmem>>, vector<1x1xf32>
    %21 = vector.broadcast %20 : vector<1x1xf32> to vector<1x128xf32>
    %22 = arith.addf %19, %21 : vector<1x128xf32>
    %c0_17 = arith.constant 0 : index
    %c0_18 = arith.constant 0 : index
    %23 = vector.load %arg8[%c0_17, %c0_18] : memref<1x128xf32, #tpu.memory_space<vmem>>, vector<1x128xf32>
    tpu.vector_store %arg8[%c0_17, %c0_18], %22 {strides = array<i32>} : memref<1x128xf32, #tpu.memory_space<vmem>>, vector<1x128xf32>,
    return
  }
  func.func @transform_0(%arg0: i32) -> (i32, i32) {
    %c0_i32 = arith.constant 0 : i32
    %c0_i32_0 = arith.constant 0 : i32
    return %arg0, %c0_i32 : i32, i32
  }
  func.func @transform_1(%arg0: i32) -> (i32, i32) {
    %c0_i32 = arith.constant 0 : i32
    %c0_i32_0 = arith.constant 0 : i32
    %c0_i32_1 = arith.constant 0 : i32
    return %c0_i32, %c0_i32_0 : i32, i32
  }
  func.func @transform_2(%arg0: i32) -> (i32, i32) {
    %c0_i32 = arith.constant 0 : i32
    %c0_i32_0 = arith.constant 0 : i32
    %c0_i32_1 = arith.constant 0 : i32
    return %c0_i32, %c0_i32_0 : i32, i32
  }
  func.func @transform_3(%arg0: i32) -> (i32, i32) {
    %c0_i32 = arith.constant 0 : i32
    %c0_i32_0 = arith.constant 0 : i32
    %c0_i32_1 = arith.constant 0 : i32
    return %c0_i32, %c0_i32_0 : i32, i32
  }
  func.func @transform_4(%arg0: i32) -> (i32, i32) {
    %c0_i32 = arith.constant 0 : i32
    %c0_i32_0 = arith.constant 0 : i32
    %c0_i32_1 = arith.constant 0 : i32
    return %c0_i32, %c0_i32_0 : i32, i32
  }
  func.func @transform_5(%arg0: i32) -> (i32, i32) {
    %c0_i32 = arith.constant 0 : i32
    %c0_i32_0 = arith.constant 0 : i32
    %c0_i32_1 = arith.constant 0 : i32
    return %c0_i32, %c0_i32_0 : i32, i32
  }
  func.func @transform_6(%arg0: i32) -> (i32, i32) {
    %c0_i32 = arith.constant 0 : i32
    %c0_i32_0 = arith.constant 0 : i32
    %c0_i32_1 = arith.constant 0 : i32
    return %c0_i32, %c0_i32_0 : i32, i32
  }
  func.func @transform_7(%arg0: i32) -> (i32, i32) {
    %c0_i32 = arith.constant 0 : i32
    %c0_i32_0 = arith.constant 0 : i32
    return %c0_i32, %arg0 : i32, i32
  }
}

</mosaic_0001>

<llo_original>
// kernel: tpu_custom_call.1
$region0: #{tpu_custom_call.1}
  #allocation0 [shape = 'u32[]', space=smem, size = 0x4, offset = 0x4, fixed_abs, tag = 'smem constant byte address 0x4 - core index']
  #allocation1 [shape = 'u32[144,128]{1,0:T(1,128)}', space=vmem, size = 0x12000, scoped, tag = 'internal scratch']
  #allocation2 [shape = 'f32[1,1]{1,0:T(1,128)S(1)}', space=vmem, size = 0x200, scoped, tag = 'scoped memory for tpu_custom_call.1']
  %s0 = inlined_call_operand.vmem [shape: f32[300,41], index: 0, kind: input, shape index: {}]
  %s1 = inlined_call_operand.vmem [shape: bf16[41,128], index: 1, kind: input, shape index: {}]
  %s2 = inlined_call_operand.vmem [shape: f32[1,128], index: 2, kind: input, shape index: {}]
  %s3 = inlined_call_operand.vmem [shape: bf16[128,64], index: 3, kind: input, shape index: {}]
  %s4 = inlined_call_operand.vmem [shape: f32[1,64], index: 4, kind: input, shape index: {}]
  %s5 = inlined_call_operand.vmem [shape: bf16[1,64], index: 5, kind: input, shape index: {}]
  %s6 = inlined_call_operand.<no memory space> [shape: f32[1,1], index: 6, kind: input, shape index: {}]
  %s7 = inlined_call_operand.hbm [shape: f32[1,384], index: 7, kind: output, shape index: {}]
  %s8 = sld [smem:[#allocation0]]
  $region61: #{tpu_custom_call.1} parent=0
    _
  %s10 = ssub.s32 1, %s8
  %s11 = scalar_select 0, %s10, %s8
  %v12 = vstv %s6
  %13 = vst [vmem:[#allocation2] sm:$0x1] %v12
  $region1: #{tpu_custom_call.1} parent=0
    #allocation3 [shape = 'u8[1024]{0}', space=vmem, size = 0x400, scoped, tag = 'output window, operand 0']
    #allocation4 [shape = 's32[2]{0}', space=sflag, size = 0x8, scoped, tag = 'scoped memory for tpu_custom_call.1']
    %14 = vsyncpa [#allocation4], 0
    %s15 = scalar_lea.sflag [#allocation4], 1
    %16 = vsyncpa %s15, 0
    loop: start=0, step=1, limit=5
    $region2: #{tpu_custom_call.1} parent=1 // loop_pre_header
      _
    $region3: #{tpu_custom_call.1} parent=1 // loop_header
      %s18 = sphi 0, %s22
      %p19 = scmp.ge.s32.totalorder %s18, 5
      %s28 = sphi 0, %s30
      %s31 = sphi 0, %s28
      %s32 = sphi 0, %s31
      %s48 = sphi 0, %s32
      %s52 = sphi 0, %s52
      %s54 = sphi 0, %s52
      %s55 = sphi 0, %s54
      %s69 = sphi 0, %s55
      %s73 = sphi 0, %s73
      %s75 = sphi 0, %s73
      %s76 = sphi 0, %s75
      %s90 = sphi 0, %s76
      %s94 = sphi 0, %s94
      %s96 = sphi 0, %s94
      %s97 = sphi 0, %s96
      %s111 = sphi 0, %s97
      %s115 = sphi 0, %s115
      %s117 = sphi 0, %s115
      %s118 = sphi 0, %s117
      %s132 = sphi 0, %s118
      %s136 = sphi 0, %s136
      %s138 = sphi 0, %s136
      %s139 = sphi 0, %s138
      %s153 = sphi 0, %s139
      %s157 = sphi 0, %s157
      %s159 = sphi 0, %s157
      %s160 = sphi 0, %s159
      %s174 = sphi 0, %s160
      %s180 = sphi 0, %s182
      %s183 = sphi 0, %s180
      %s184 = sphi 0, %s183
      %s200 = sphi 0, %s184
    $region4: #{tpu_custom_call.1} parent=1 // loop_header_branch
      %21 = sbr.rel (%p19) target = $region8
    $region5: #{tpu_custom_call.1} parent=1 // loop_body
      %s23 = ssub.s32 %s18, 1
      %s24 = ssub.s32 %s18, 2
      %s25 = sadd.s32 %s18, 1
      %s26 = ssub.s32 %s18, %s25
      %p27 = scmp.eq.s32.totalorder %s26, 0
      %s29 = sadd.s32 %s28, 1
      %s30 = scalar_select %p27, %s28, %s29
      %p33 = pneg %p27
      %p34 = scmp.eq.s32.totalorder %s18, 2
      %p35 = por %p33, %p34
      %p36 = scmp.ne.s32.totalorder %s28, %s31
      %p37 = scmp.eq.s32.totalorder %s18, 0
      %p38 = por %p36, %p37
      %p39 = scmp.ne.s32.totalorder %s28, %s31
      %p40 = scmp.eq.s32.totalorder %s23, 2
      %p41 = por %p39, %p40
      %p42 = scmp.ne.s32.totalorder %s31, %s32
      %p43 = scmp.eq.s32.totalorder %s23, 0
      %p44 = por %p42, %p43
      %p45 = scmp.ne.s32.totalorder %s31, %s32
      %p46 = scmp.eq.s32.totalorder %s24, 2
      %p47 = por %p45, %p46
      %p49 = scmp.ne.s32.totalorder %s32, %s48
      %p50 = scmp.eq.s32.totalorder %s24, 0
      %p51 = por %p49, %p50
      %s53 = sadd.s32 %s52, 1
      %p56 = scmp.eq.s32.totalorder %s18, 2
      %p57 = scmp.ne.s32.totalorder %s52, %s54
      %p58 = scmp.eq.s32.totalorder %s18, 0
      %p59 = por %p57, %p58
      %p60 = scmp.ne.s32.totalorder %s52, %s54
      %p61 = scmp.eq.s32.totalorder %s23, 2
      %p62 = por %p60, %p61
      %p63 = scmp.ne.s32.totalorder %s54, %s55
      %p64 = scmp.eq.s32.totalorder %s23, 0
      %p65 = por %p63, %p64
      %p66 = scmp.ne.s32.totalorder %s54, %s55
      %p67 = scmp.eq.s32.totalorder %s24, 2
      %p68 = por %p66, %p67
      %p70 = scmp.ne.s32.totalorder %s55, %s69
      %p71 = scmp.eq.s32.totalorder %s24, 0
      %p72 = por %p70, %p71
      %s74 = sadd.s32 %s73, 1
      %p77 = scmp.eq.s32.totalorder %s18, 2
      %p78 = scmp.ne.s32.totalorder %s73, %s75
      %p79 = scmp.eq.s32.totalorder %s18, 0
      %p80 = por %p78, %p79
      %p81 = scmp.ne.s32.totalorder %s73, %s75
      %p82 = scmp.eq.s32.totalorder %s23, 2
      %p83 = por %p81, %p82
      %p84 = scmp.ne.s32.totalorder %s75, %s76
      %p85 = scmp.eq.s32.totalorder %s23, 0
      %p86 = por %p84, %p85
      %p87 = scmp.ne.s32.totalorder %s75, %s76
      %p88 = scmp.eq.s32.totalorder %s24, 2
      %p89 = por %p87, %p88
      %p91 = scmp.ne.s32.totalorder %s76, %s90
      %p92 = scmp.eq.s32.totalorder %s24, 0
      %p93 = por %p91, %p92
      %s95 = sadd.s32 %s94, 1
      %p98 = scmp.eq.s32.totalorder %s18, 2
      %p99 = scmp.ne.s32.totalorder %s94, %s96
      %p100 = scmp.eq.s32.totalorder %s18, 0
      %p101 = por %p99, %p100
      %p102 = scmp.ne.s32.totalorder %s94, %s96
      %p103 = scmp.eq.s32.totalorder %s23, 2
      %p104 = por %p102, %p103
      %p105 = scmp.ne.s32.totalorder %s96, %s97
      %p106 = scmp.eq.s32.totalorder %s23, 0
      %p107 = por %p105, %p106
      %p108 = scmp.ne.s32.totalorder %s96, %s97
      %p109 = scmp.eq.s32.totalorder %s24, 2
      %p110 = por %p108, %p109
      %p112 = scmp.ne.s32.totalorder %s97, %s111
      %p113 = scmp.eq.s32.totalorder %s24, 0
      %p114 = por %p112, %p113
      %s116 = sadd.s32 %s115, 1
      %p119 = scmp.eq.s32.totalorder %s18, 2
      %p120 = scmp.ne.s32.totalorder %s115, %s117
      %p121 = scmp.eq.s32.totalorder %s18, 0
      %p122 = por %p120, %p121
      %p123 = scmp.ne.s32.totalorder %s115, %s117
      %p124 = scmp.eq.s32.totalorder %s23, 2
      %p125 = por %p123, %p124
      %p126 = scmp.ne.s32.totalorder %s117, %s118
      %p127 = scmp.eq.s32.totalorder %s23, 0
      %p128 = por %p126, %p127
      %p129 = scmp.ne.s32.totalorder %s117, %s118
      %p130 = scmp.eq.s32.totalorder %s24, 2
      %p131 = por %p129, %p130
      %p133 = scmp.ne.s32.totalorder %s118, %s132
      %p134 = scmp.eq.s32.totalorder %s24, 0
      %p135 = por %p133, %p134
      %s137 = sadd.s32 %s136, 1
      %p140 = scmp.eq.s32.totalorder %s18, 2
      %p141 = scmp.ne.s32.totalorder %s136, %s138
      %p142 = scmp.eq.s32.totalorder %s18, 0
      %p143 = por %p141, %p142
      %p144 = scmp.ne.s32.totalorder %s136, %s138
      %p145 = scmp.eq.s32.totalorder %s23, 2
      %p146 = por %p144, %p145
      %p147 = scmp.ne.s32.totalorder %s138, %s139
      %p148 = scmp.eq.s32.totalorder %s23, 0
      %p149 = por %p147, %p148
      %p150 = scmp.ne.s32.totalorder %s138, %s139
      %p151 = scmp.eq.s32.totalorder %s24, 2
      %p152 = por %p150, %p151
      %p154 = scmp.ne.s32.totalorder %s139, %s153
      %p155 = scmp.eq.s32.totalorder %s24, 0
      %p156 = por %p154, %p155
      %s158 = sadd.s32 %s157, 1
      %p161 = scmp.eq.s32.totalorder %s18, 2
      %p162 = scmp.ne.s32.totalorder %s157, %s159
      %p163 = scmp.eq.s32.totalorder %s18, 0
      %p164 = por %p162, %p163
      %p165 = scmp.ne.s32.totalorder %s157, %s159
      %p166 = scmp.eq.s32.totalorder %s23, 2
      %p167 = por %p165, %p166
      %p168 = scmp.ne.s32.totalorder %s159, %s160
      %p169 = scmp.eq.s32.totalorder %s23, 0
      %p170 = por %p168, %p169
      %p171 = scmp.ne.s32.totalorder %s159, %s160
      %p172 = scmp.eq.s32.totalorder %s24, 2
      %p173 = por %p171, %p172
      %p175 = scmp.ne.s32.totalorder %s160, %s174
      %p176 = scmp.eq.s32.totalorder %s24, 0
      %p177 = por %p175, %p176
      %s178 = ssub.s32 %s18, %s25
      %p179 = scmp.eq.s32.totalorder %s178, 0
      %s181 = sadd.s32 %s180, 1
      %s182 = scalar_select %p179, %s180, %s181
      %p185 = pneg %p179
      %p186 = scmp.eq.s32.totalorder %s18, 2
      %p187 = por %p185, %p186
      %p188 = scmp.ne.s32.totalorder %s180, %s183
      %p189 = scmp.eq.s32.totalorder %s18, 0
      %p190 = por %p188, %p189
      %p191 = scmp.ne.s32.totalorder %s180, %s183
      %p192 = scmp.eq.s32.totalorder %s23, 2
      %p193 = por %p191, %p192
      %p194 = scmp.ne.s32.totalorder %s183, %s184
      %p195 = scmp.eq.s32.totalorder %s23, 0
      %p196 = por %p194, %p195
      %p197 = scmp.ne.s32.totalorder %s183, %s184
      %p198 = scmp.eq.s32.totalorder %s24, 2
      %p199 = por %p197, %p198
      %p201 = scmp.ne.s32.totalorder %s184, %s200
      %p202 = scmp.eq.s32.totalorder %s24, 0
      %p203 = por %p201, %p202
      %p204 = scmp.le.s32.totalorder 1, %s18
      %p205 = scmp.lt.s32.totalorder %s18, 4
      %p206 = pnand %p204, %p205
      %p207 = pneg %p206
      // Predicated region
      $region9: #{tpu_custom_call.1} parent=5 // pred_check
        _
      $region10: #{tpu_custom_call.1} parent=5 // pred_check_branch
        %209 = sbr.rel (%p206) target = $region12
      $region11: #{tpu_custom_call.1} parent=5 // pred_region
        %s210 = ssub.s32 %s18, 1
        // Predicated region
        $region13: #{tpu_custom_call.1} parent=11 // pred_check
          %p211 = pneg %p65
        $region14: #{tpu_custom_call.1} parent=11 // pred_check_branch
          %213 = sbr.rel (%p211) target = $region16
        $region15: #{tpu_custom_call.1} parent=11 // pred_region
          _
        $region16: #{tpu_custom_call.1} parent=11 // pred_fallthru
          _
        // Predicated region
        $region17: #{tpu_custom_call.1} parent=11 // pred_check
          %p214 = pneg %p86
        $region18: #{tpu_custom_call.1} parent=11 // pred_check_branch
          %216 = sbr.rel (%p214) target = $region20
        $region19: #{tpu_custom_call.1} parent=11 // pred_region
          _
        $region20: #{tpu_custom_call.1} parent=11 // pred_fallthru
          _
        // Predicated region
        $region21: #{tpu_custom_call.1} parent=11 // pred_check
          %p217 = pneg %p107
        $region22: #{tpu_custom_call.1} parent=11 // pred_check_branch
          %219 = sbr.rel (%p217) target = $region24
        $region23: #{tpu_custom_call.1} parent=11 // pred_region
          _
        $region24: #{tpu_custom_call.1} parent=11 // pred_fallthru
          _
        // Predicated region
        $region25: #{tpu_custom_call.1} parent=11 // pred_check
          %p220 = pneg %p128
        $region26: #{tpu_custom_call.1} parent=11 // pred_check_branch
          %222 = sbr.rel (%p220) target = $region28
        $region27: #{tpu_custom_call.1} parent=11 // pred_region
          _
        $region28: #{tpu_custom_call.1} parent=11 // pred_fallthru
          _
        // Predicated region
        $region29: #{tpu_custom_call.1} parent=11 // pred_check
          %p223 = pneg %p149
        $region30: #{tpu_custom_call.1} parent=11 // pred_check_branch
          %225 = sbr.rel (%p223) target = $region32
        $region31: #{tpu_custom_call.1} parent=11 // pred_region
          _
        $region32: #{tpu_custom_call.1} parent=11 // pred_fallthru
          _
        // Predicated region
        $region33: #{tpu_custom_call.1} parent=11 // pred_check
          %p226 = pneg %p170
        $region34: #{tpu_custom_call.1} parent=11 // pred_check_branch
          %228 = sbr.rel (%p226) target = $region36
        $region35: #{tpu_custom_call.1} parent=11 // pred_region
          _
        $region36: #{tpu_custom_call.1} parent=11 // pred_fallthru
          _
      $region12: #{tpu_custom_call.1} parent=5 // pred_fallthru
        _
      %p229 = scmp.lt.s32.totalorder %s18, 3
      // Predicated region
      $region37: #{tpu_custom_call.1} parent=5 // pred_check
        %p230 = pneg %p229
      $region38: #{tpu_custom_call.1} parent=5 // pred_check_branch
        %232 = sbr.rel (%p230) target = $region40
      $region39: #{tpu_custom_call.1} parent=5 // pred_region
        // Predicated region
        $region41: #{tpu_custom_call.1} parent=39 // pred_check
          %p233 = pneg %p38
        $region42: #{tpu_custom_call.1} parent=39 // pred_check_branch
          %235 = sbr.rel (%p233) target = $region44
        $region43: #{tpu_custom_call.1} parent=39 // pred_region
          %s236 = smul.u32 16, %s18
          %s237 = ssub.s32 38, %s236
          %p238 = scmp.lt.s32.totalorder %s237, 16
          %s239 = scalar_select %p238, %s237, 16
          %s240 = smul.u32 128, %s239
          %p241 = scmp.lt.s32.totalorder %s236, 37
          %s242 = scalar_select %p241, %s236, 37
          %s243 = smul.addr %s242, 8
          %s244 = scalar_lea.vmem %s0, %s243
          %s245 = smul.u32 16, %s18
          %s246 = ssub.s32 38, %s245
          %p247 = scmp.lt.s32.totalorder %s246, 16
          %s248 = scalar_select %p247, %s246, 16
          %s249 = smul.u32 128, %s248
        $region44: #{tpu_custom_call.1} parent=39 // pred_fallthru
          _
      $region40: #{tpu_custom_call.1} parent=5 // pred_fallthru
        _
      %p250 = scmp.le.s32.totalorder 1, %s18
      %p251 = scmp.lt.s32.totalorder %s18, 4
      %p252 = pnand %p250, %p251
      %p253 = pneg %p252
      // Predicated region
      $region45: #{tpu_custom_call.1} parent=5 // pred_check
        _
      $region46: #{tpu_custom_call.1} parent=5 // pred_check_branch
        %255 = sbr.rel (%p252) target = $region48
      $region47: #{tpu_custom_call.1} parent=5 // pred_region
        %s256 = ssub.s32 %s18, 1
        %s257 = smul.u32 16, %s23
        %s258 = ssub.s32 38, %s257
        %p259 = scmp.lt.s32.totalorder %s258, 16
        %s260 = scalar_select %p259, %s258, 16
        %s261 = smul.u32 128, %s260
        %p262 = scmp.lt.s32.totalorder %s257, 37
        %s263 = scalar_select %p262, %s257, 37
        %s264 = smul.addr %s263, 8
        %s265 = scalar_lea.vmem %s0, %s264
        %p266 = pneg %p44
        %p267 = pneg %p41
        %p268 = pneg %p65
        %p269 = pneg %p62
        %p270 = pneg %p86
        %p271 = pneg %p83
        %p272 = pneg %p107
        %p273 = pneg %p104
        %p274 = pneg %p128
        %p275 = pneg %p125
        %p276 = pneg %p149
        %p277 = pneg %p146
        %p278 = pneg %p170
        %p279 = pneg %p167
        %p280 = pneg %p196
        %p281 = pneg %p193
        %s282 = sand.u32 %s183, 1
        %s283 = scalar_lea.sflag [#allocation4], %s282
        %s284 = sand.u32 %s183, 1
        %s285 = scalar_lea.vmem [#allocation3], %s284
        %s286 = smul.u32 16, %s23
        %s287 = ssub.s32 38, %s286
        %p288 = scmp.lt.s32.totalorder %s287, 16
        %s289 = scalar_select %p288, %s287, 16
        %s290 = smul.u32 128, %s289
        %p291 = scmp.lt.s32.totalorder %s286, 37
        %s292 = scalar_select %p291, %s286, 37
        %s293 = smul.addr %s292, 8
        %s294 = scalar_lea.vmem %s0, %s293
        %s295 = smul.u32 16, %s23
        %s296 = ssub.s32 38, %s295
        %p297 = scmp.lt.s32.totalorder %s296, 16
        %s298 = scalar_select %p297, %s296, 16
        %s299 = smul.u32 128, %s298
        %v301 = vld [vmem:[%s294] sm:$0xff]
        %v302 = vld [vmem:[%s294 + $0x8] sm:$0xff]
        %v303 = vld [vmem:[%s294 + $0x10] sm:$0xff]
        %v304 = vld [vmem:[%s294 + $0x18] sm:$0xff]
        %v305 = vld [vmem:[%s294 + $0x20] sm:$0xff]
        %v306 = vld [vmem:[%s294 + $0x28] sm:$0xff]
        %v307 = vld [vmem:[%s294 + $0x30] sm:$0xff]
        %v308 = vld [vmem:[%s294 + $0x38] sm:$0xff]
        %v309 = vld [vmem:[%s294 + $0x40] sm:$0xff]
        %v310 = vld [vmem:[%s294 + $0x48] sm:$0xff]
        %v311 = vld [vmem:[%s294 + $0x50] sm:$0xff]
        %v312 = vld [vmem:[%s294 + $0x58] sm:$0xff]
        %v313 = vld [vmem:[%s294 + $0x60] sm:$0xff]
        %v314 = vld [vmem:[%s294 + $0x68] sm:$0xff]
        %v315 = vld [vmem:[%s294 + $0x70] sm:$0xff]
        %v316 = vld [vmem:[%s294 + $0x78] sm:$0xff]
        %v317 = vpack.c.bf16 %v302, %v301
        %v318 = vpack.c.bf16 %v304, %v303
        %v319 = vpack.c.bf16 %v306, %v305
        %v320 = vpack.c.bf16 %v308, %v307
        %v321 = vpack.c.bf16 %v310, %v309
        %v322 = vpack.c.bf16 %v312, %v311
        %v323 = vpack.c.bf16 %v314, %v313
        %v324 = vpack.c.bf16 %v316, %v315
        %v325 = vld [vmem:[%s1] sm:$0xf]
        %v326 = vld [vmem:[%s1 + $0x4] sm:$0xf]
        %v327 = vld [vmem:[%s1 + $0x8] sm:$0xf]
        %v328 = vld [vmem:[%s1 + $0xc] sm:$0xf]
        %v329 = vld [vmem:[%s1 + $0x10] sm:$0xf]
        %v330 = vld [vmem:[%s1 + $0x14] sm:$0x1]
        %v331 = vld [vmem:[%s2] sm:$0x1]
        %v333 = vlaneseq
        %v334 = vshrl.u32 %v333, 7
        %v335 = vsub.s32 0, %v334
        %v336 = vrot.slane %v331, %v335
        %v344 = vunpack.c.l.b16 %v325
        %v345 = vunpack.c.l.b16 %v326
        %v346 = vunpack.c.l.b16 %v327
        %v347 = vunpack.c.l.b16 %v328
        %v348 = vunpack.c.l.b16 %v329
        %v349 = vunpack.c.l.b16 %v330
        %v350 = vpack.c.b16 %v345, %v344
        %v351 = vpack.c.b16 %v347, %v346
        %v352 = vpack.c.b16 %v349, %v348
        %vm355 = vcmask 334848
        %v357 = vsel %vm355, %v317, 0
        %v360 = vsel %vm355, %v318, 0
        %v363 = vsel %vm355, %v319, 0
        %v366 = vsel %vm355, %v320, 0
        %v369 = vsel %vm355, %v321, 0
        %v372 = vsel %vm355, %v322, 0
        %v375 = vsel %vm355, %v323, 0
        %v378 = vsel %vm355, %v324, 0
        %vm380 = vcmask 1043456
        %vm381 = vcmask 1044480
        %v382 = vsel %vm380, 4294967295, 65535
        %v383 = vsel %vm381, %v382, 0
        %v385 = vand.u32 %v352, %v383
        %387 = vmatprep.subr.bf16.mxu0 0
        %388 = vmatpush1.bf16.msra.mxu0 %v350
        %389 = vmatprep.subr.bf16.mxu0 0
        %390 = vmatpush1.bf16.msra.mxu0 %v351
        %391 = vmatprep.subr.bf16.mxu0 0
        %392 = vmatpush1.bf16.msra.mxu0 %v385
        %393 = vmatprep.subr.bf16.mxu0 0
        %394 = vmatpush1.bf16.msra.mxu0 0
        %395 = vmatprep.subr.bf16.mxu0 0
        %396 = vmatpush1.bf16.msra.mxu0 0
        %397 = vmatprep.subr.bf16.mxu0 0
        %398 = vmatpush1.bf16.msra.mxu0 0
        %399 = vmatprep.subr.bf16.mxu0 0
        %400 = vmatpush1.bf16.msra.mxu0 0
        %401 = vmatprep.subr.bf16.mxu0 0
        %402 = vmatpush1.bf16.msra.mxu0 0
        %403 = vmatprep.subr.bf16.mxu0 0
        %404 = vmatpush1.bf16.msra.mxu0 0
        %405 = vmatprep.subr.bf16.mxu0 0
        %406 = vmatpush1.bf16.msra.mxu0 0
        %407 = vmatprep.subr.bf16.mxu0 0
        %408 = vmatpush1.bf16.msra.mxu0 0
        %409 = vmatprep.subr.bf16.mxu0 0
        %410 = vmatpush1.bf16.msra.mxu0 0
        %411 = vmatprep.subr.bf16.mxu0 0
        %412 = vmatpush1.bf16.msra.mxu0 0
        %413 = vmatprep.subr.bf16.mxu0 0
        %414 = vmatpush1.bf16.msra.mxu0 0
        %415 = vmatprep.subr.bf16.mxu0 0
        %416 = vmatpush1.bf16.msra.mxu0 0
        %417 = vmatprep.subr.bf16.mxu0 0
        %418 = vmatpush1.bf16.msra.mxu0 0
        %419 = vmatprep.mubr.bf16.mxu0 0
        %420 = vmatmul.mubr.bf16.gmra.mrb[0].mxu0 %v357
        %v421 = vpop.f32.mrb[0].mxu0
        %v422 = vadd.f32 %v336, %v421
        %v423 = vpop.f32.mrb[0].mxu0
        %v424 = vpop.f32.mrb[0].mxu0
        %v425 = vadd.f32 %v336, %v424
        %v426 = vpop.f32.mrb[0].mxu0
        %427 = vmatprep.mubr.bf16.mxu0 0
        %428 = vmatmul.mubr.bf16.gmra.mrb[0].mxu0 %v360
        %v429 = vpop.f32.mrb[0].mxu0
        %v430 = vadd.f32 %v336, %v429
        %v431 = vpop.f32.mrb[0].mxu0
        %v432 = vpop.f32.mrb[0].mxu0
        %v433 = vadd.f32 %v336, %v432
        %v434 = vpop.f32.mrb[0].mxu0
        %435 = vmatprep.mubr.bf16.mxu0 0
        %436 = vmatmul.mubr.bf16.gmra.mrb[0].mxu0 %v363
        %v437 = vpop.f32.mrb[0].mxu0
        %v438 = vadd.f32 %v336, %v437
        %v439 = vpop.f32.mrb[0].mxu0
        %v440 = vpop.f32.mrb[0].mxu0
        %v441 = vadd.f32 %v336, %v440
        %v442 = vpop.f32.mrb[0].mxu0
        %443 = vmatprep.mubr.bf16.mxu0 0
        %444 = vmatmul.mubr.bf16.gmra.mrb[0].mxu0 %v366
        %v445 = vpop.f32.mrb[0].mxu0
        %v446 = vadd.f32 %v336, %v445
        %v447 = vpop.f32.mrb[0].mxu0
        %v448 = vpop.f32.mrb[0].mxu0
        %v449 = vadd.f32 %v336, %v448
        %v450 = vpop.f32.mrb[0].mxu0
        %451 = vmatprep.mubr.bf16.mxu0 0
        %452 = vmatmul.mubr.bf16.gmra.mrb[0].mxu0 %v369
        %v453 = vpop.f32.mrb[0].mxu0
        %v454 = vadd.f32 %v336, %v453
        %v455 = vpop.f32.mrb[0].mxu0
        %v456 = vpop.f32.mrb[0].mxu0
        %v457 = vadd.f32 %v336, %v456
        %v458 = vpop.f32.mrb[0].mxu0
        %459 = vmatprep.mubr.bf16.mxu0 0
        %460 = vmatmul.mubr.bf16.gmra.mrb[0].mxu0 %v372
        %v461 = vpop.f32.mrb[0].mxu0
        %v462 = vadd.f32 %v336, %v461
        %v463 = vpop.f32.mrb[0].mxu0
        %v464 = vpop.f32.mrb[0].mxu0
        %v465 = vadd.f32 %v336, %v464
        %v466 = vpop.f32.mrb[0].mxu0
        %467 = vmatprep.mubr.bf16.mxu0 0
        %468 = vmatmul.mubr.bf16.gmra.mrb[0].mxu0 %v375
        %v469 = vpop.f32.mrb[0].mxu0
        %v470 = vadd.f32 %v336, %v469
        %v471 = vpop.f32.mrb[0].mxu0
        %v472 = vpop.f32.mrb[0].mxu0
        %v473 = vadd.f32 %v336, %v472
        %v474 = vpop.f32.mrb[0].mxu0
        %475 = vmatprep.mubr.bf16.mxu0 0
        %476 = vmatmul.mubr.bf16.gmra.mrb[0].mxu0 %v378
        %v477 = vpop.f32.mrb[0].mxu0
        %v478 = vadd.f32 %v336, %v477
        %v479 = vpop.f32.mrb[0].mxu0
        %v480 = vpop.f32.mrb[0].mxu0
        %v481 = vadd.f32 %v336, %v480
        %v482 = vpop.f32.mrb[0].mxu0
        %483 = vdwg.mxu0
        %v484 = vmax.f32 %v422, 0.0
        %v485 = vmax.f32 %v425, 0.0
        %v486 = vmax.f32 %v430, 0.0
        %v487 = vmax.f32 %v433, 0.0
        %v488 = vmax.f32 %v438, 0.0
        %v489 = vmax.f32 %v441, 0.0
        %v490 = vmax.f32 %v446, 0.0
        %v491 = vmax.f32 %v449, 0.0
        %v492 = vmax.f32 %v454, 0.0
        %v493 = vmax.f32 %v457, 0.0
        %v494 = vmax.f32 %v462, 0.0
        %v495 = vmax.f32 %v465, 0.0
        %v496 = vmax.f32 %v470, 0.0
        %v497 = vmax.f32 %v473, 0.0
        %v498 = vmax.f32 %v478, 0.0
        %v499 = vmax.f32 %v481, 0.0
        %v500 = vpack.c.bf16 %v485, %v484
        %v501 = vpack.c.bf16 %v487, %v486
        %v502 = vpack.c.bf16 %v489, %v488
        %v503 = vpack.c.bf16 %v491, %v490
        %v504 = vpack.c.bf16 %v493, %v492
        %v505 = vpack.c.bf16 %v495, %v494
        %v506 = vpack.c.bf16 %v497, %v496
        %v507 = vpack.c.bf16 %v499, %v498
        %v508 = vld [vmem:[%s3] sm:$0xf]
        %v509 = vld [vmem:[%s3 + $0x4] sm:$0xf]
        %v510 = vld [vmem:[%s3 + $0x8] sm:$0xf]
        %v511 = vld [vmem:[%s3 + $0xc] sm:$0xf]
        %v512 = vld [vmem:[%s3 + $0x10] sm:$0xf]
        %v513 = vld [vmem:[%s3 + $0x14] sm:$0xf]
        %v514 = vld [vmem:[%s3 + $0x18] sm:$0xf]
        %v515 = vld [vmem:[%s3 + $0x1c] sm:$0xf]
        %v516 = vld [vmem:[%s3 + $0x20] sm:$0xf]
        %v517 = vld [vmem:[%s3 + $0x24] sm:$0xf]
        %v518 = vld [vmem:[%s3 + $0x28] sm:$0xf]
        %v519 = vld [vmem:[%s3 + $0x2c] sm:$0xf]
        %v520 = vld [vmem:[%s3 + $0x30] sm:$0xf]
        %v521 = vld [vmem:[%s3 + $0x34] sm:$0xf]
        %v522 = vld [vmem:[%s3 + $0x38] sm:$0xf]
        %v523 = vld [vmem:[%s3 + $0x3c] sm:$0xf]
        %v524 = vld [vmem:[%s4] sm:$0x1]
        %v526 = vlaneseq
        %v527 = vshrl.u32 %v526, 7
        %v528 = vsub.s32 0, %v527
        %v529 = vrot.slane %v524, %v528
        %v547 = vunpack.c.l.b16 %v508
        %v548 = vunpack.c.l.b16 %v509
        %v549 = vunpack.c.l.b16 %v510
        %v550 = vunpack.c.l.b16 %v511
        %v551 = vunpack.c.l.b16 %v512
        %v552 = vunpack.c.l.b16 %v513
        %v553 = vunpack.c.l.b16 %v514
        %v554 = vunpack.c.l.b16 %v515
        %v555 = vunpack.c.l.b16 %v516
        %v556 = vunpack.c.l.b16 %v517
        %v557 = vunpack.c.l.b16 %v518
        %v558 = vunpack.c.l.b16 %v519
        %v559 = vunpack.c.l.b16 %v520
        %v560 = vunpack.c.l.b16 %v521
        %v561 = vunpack.c.l.b16 %v522
        %v562 = vunpack.c.l.b16 %v523
        %v563 = vpack.c.b16 %v548, %v547
        %v564 = vpack.c.b16 %v550, %v549
        %v565 = vpack.c.b16 %v552, %v551
        %v566 = vpack.c.b16 %v554, %v553
        %v567 = vpack.c.b16 %v556, %v555
        %v568 = vpack.c.b16 %v558, %v557
        %v569 = vpack.c.b16 %v560, %v559
        %v570 = vpack.c.b16 %v562, %v561
        %579 = vmatprep.subr.bf16.mxu0 0
        %580 = vmatpush1.bf16.msra.mxu0 %v563
        %581 = vmatprep.subr.bf16.mxu0 0
        %582 = vmatpush1.bf16.msra.mxu0 %v564
        %583 = vmatprep.subr.bf16.mxu0 0
        %584 = vmatpush1.bf16.msra.mxu0 %v565
        %585 = vmatprep.subr.bf16.mxu0 0
        %586 = vmatpush1.bf16.msra.mxu0 %v566
        %587 = vmatprep.subr.bf16.mxu0 0
        %588 = vmatpush1.bf16.msra.mxu0 %v567
        %589 = vmatprep.subr.bf16.mxu0 0
        %590 = vmatpush1.bf16.msra.mxu0 %v568
        %591 = vmatprep.subr.bf16.mxu0 0
        %592 = vmatpush1.bf16.msra.mxu0 %v569
        %593 = vmatprep.subr.bf16.mxu0 0
        %594 = vmatpush1.bf16.msra.mxu0 %v570
        %595 = vmatprep.subr.bf16.mxu0 0
        %596 = vmatpush1.bf16.msra.mxu0 0
        %597 = vmatprep.subr.bf16.mxu0 0
        %598 = vmatpush1.bf16.msra.mxu0 0
        %599 = vmatprep.subr.bf16.mxu0 0
        %600 = vmatpush1.bf16.msra.mxu0 0
        %601 = vmatprep.subr.bf16.mxu0 0
        %602 = vmatpush1.bf16.msra.mxu0 0
        %603 = vmatprep.subr.bf16.mxu0 0
        %604 = vmatpush1.bf16.msra.mxu0 0
        %605 = vmatprep.subr.bf16.mxu0 0
        %606 = vmatpush1.bf16.msra.mxu0 0
        %607 = vmatprep.subr.bf16.mxu0 0
        %608 = vmatpush1.bf16.msra.mxu0 0
        %609 = vmatprep.subr.bf16.mxu0 0
        %610 = vmatpush1.bf16.msra.mxu0 0
        %611 = vmatprep.mubr.bf16.mxu0 0
        %612 = vmatmul.mubr.bf16.gmra.mrb[0].mxu0 %v500
        %v613 = vpop.f32.mrb[0].mxu0
        %v614 = vadd.f32 %v529, %v613
        %v615 = vpop.f32.mrb[0].mxu0
        %v616 = vpop.f32.mrb[0].mxu0
        %v617 = vadd.f32 %v529, %v616
        %v618 = vpop.f32.mrb[0].mxu0
        %619 = vmatprep.mubr.bf16.mxu0 0
        %620 = vmatmul.mubr.bf16.gmra.mrb[0].mxu0 %v501
        %v621 = vpop.f32.mrb[0].mxu0
        %v622 = vadd.f32 %v529, %v621
        %v623 = vpop.f32.mrb[0].mxu0
        %v624 = vpop.f32.mrb[0].mxu0
        %v625 = vadd.f32 %v529, %v624
        %v626 = vpop.f32.mrb[0].mxu0
        %627 = vmatprep.mubr.bf16.mxu0 0
        %628 = vmatmul.mubr.bf16.gmra.mrb[0].mxu0 %v502
        %v629 = vpop.f32.mrb[0].mxu0
        %v630 = vadd.f32 %v529, %v629
        %v631 = vpop.f32.mrb[0].mxu0
        %v632 = vpop.f32.mrb[0].mxu0
        %v633 = vadd.f32 %v529, %v632
        %v634 = vpop.f32.mrb[0].mxu0
        %635 = vmatprep.mubr.bf16.mxu0 0
        %636 = vmatmul.mubr.bf16.gmra.mrb[0].mxu0 %v503
        %v637 = vpop.f32.mrb[0].mxu0
        %v638 = vadd.f32 %v529, %v637
        %v639 = vpop.f32.mrb[0].mxu0
        %v640 = vpop.f32.mrb[0].mxu0
        %v641 = vadd.f32 %v529, %v640
        %v642 = vpop.f32.mrb[0].mxu0
        %643 = vmatprep.mubr.bf16.mxu0 0
        %644 = vmatmul.mubr.bf16.gmra.mrb[0].mxu0 %v504
        %v645 = vpop.f32.mrb[0].mxu0
        %v646 = vadd.f32 %v529, %v645
        %v647 = vpop.f32.mrb[0].mxu0
        %v648 = vpop.f32.mrb[0].mxu0
        %v649 = vadd.f32 %v529, %v648
        %v650 = vpop.f32.mrb[0].mxu0
        %651 = vmatprep.mubr.bf16.mxu0 0
        %652 = vmatmul.mubr.bf16.gmra.mrb[0].mxu0 %v505
        %v653 = vpop.f32.mrb[0].mxu0
        %v654 = vadd.f32 %v529, %v653
        %v655 = vpop.f32.mrb[0].mxu0
        %v656 = vpop.f32.mrb[0].mxu0
        %v657 = vadd.f32 %v529, %v656
        %v658 = vpop.f32.mrb[0].mxu0
        %659 = vmatprep.mubr.bf16.mxu0 0
        %660 = vmatmul.mubr.bf16.gmra.mrb[0].mxu0 %v506
        %v661 = vpop.f32.mrb[0].mxu0
        %v662 = vadd.f32 %v529, %v661
        %v663 = vpop.f32.mrb[0].mxu0
        %v664 = vpop.f32.mrb[0].mxu0
        %v665 = vadd.f32 %v529, %v664
        %v666 = vpop.f32.mrb[0].mxu0
        %667 = vmatprep.mubr.bf16.mxu0 0
        %668 = vmatmul.mubr.bf16.gmra.mrb[0].mxu0 %v507
        %v669 = vpop.f32.mrb[0].mxu0
        %v670 = vadd.f32 %v529, %v669
        %v671 = vpop.f32.mrb[0].mxu0
        %v672 = vpop.f32.mrb[0].mxu0
        %v673 = vadd.f32 %v529, %v672
        %v674 = vpop.f32.mrb[0].mxu0
        %675 = vdwg.mxu0
        %v676 = vmax.f32 %v614, 0.0
        %v677 = vmax.f32 %v617, 0.0
        %v678 = vmax.f32 %v622, 0.0
        %v679 = vmax.f32 %v625, 0.0
        %v680 = vmax.f32 %v630, 0.0
        %v681 = vmax.f32 %v633, 0.0
        %v682 = vmax.f32 %v638, 0.0
        %v683 = vmax.f32 %v641, 0.0
        %v684 = vmax.f32 %v646, 0.0
        %v685 = vmax.f32 %v649, 0.0
        %v686 = vmax.f32 %v654, 0.0
        %v687 = vmax.f32 %v657, 0.0
        %v688 = vmax.f32 %v662, 0.0
        %v689 = vmax.f32 %v665, 0.0
        %v690 = vmax.f32 %v670, 0.0
        %v691 = vmax.f32 %v673, 0.0
        %v692 = vld [vmem:[%s5] sm:$0x1]
        %v693 = vpack.c.bf16 %v677, %v676
        %v694 = vpack.c.bf16 %v679, %v678
        %v695 = vpack.c.bf16 %v681, %v680
        %v696 = vpack.c.bf16 %v683, %v682
        %v697 = vpack.c.bf16 %v685, %v684
        %v698 = vpack.c.bf16 %v687, %v686
        %v699 = vpack.c.bf16 %v689, %v688
        %v700 = vpack.c.bf16 %v691, %v690
        %v701 = vld [vmem:[#allocation2] sm:$0x1]
        %703 = vset.pattern.permute.xlu0 0
        %704 = vperm.xlu0 %703, %v701
        %v705 = vpop.permute.xlu0 %704
        %v707 = vlaneseq
        %v708 = vshrl.u32 %v707, 7
        %v709 = vsub.s32 0, %v708
        %v710 = vrot.slane %v705, %v709
        %vm711 = vcmask 523264
        %v713 = vsel %vm711, %v692, 0
        %v716 = vsel %vm711, %v693, 0
        %v719 = vsel %vm711, %v694, 0
        %v722 = vsel %vm711, %v695, 0
        %v725 = vsel %vm711, %v696, 0
        %v728 = vsel %vm711, %v697, 0
        %v731 = vsel %vm711, %v698, 0
        %v734 = vsel %vm711, %v699, 0
        %v737 = vsel %vm711, %v700, 0
        %739 = vmatprep.subr.bf16.mxu0 0
        %740 = vmatpush1.bf16.xpose.msra.mxu0 %v716
        %741 = vmatprep.subr.bf16.mxu0 0
        %742 = vmatpush1.bf16.xpose.msra.mxu0 %v719
        %743 = vmatprep.subr.bf16.mxu0 0
        %744 = vmatpush1.bf16.xpose.msra.mxu0 %v722
        %745 = vmatprep.subr.bf16.mxu0 0
        %746 = vmatpush1.bf16.xpose.msra.mxu0 %v725
        %747 = vmatprep.subr.bf16.mxu0 0
        %748 = vmatpush1.bf16.xpose.msra.mxu0 %v728
        %749 = vmatprep.subr.bf16.mxu0 0
        %750 = vmatpush1.bf16.xpose.msra.mxu0 %v731
        %751 = vmatprep.subr.bf16.mxu0 0
        %752 = vmatpush1.bf16.xpose.msra.mxu0 %v734
        %753 = vmatprep.subr.bf16.mxu0 0
        %754 = vmatpush1.bf16.xpose.msra.mxu0 %v737
        %755 = vmatprep.subr.bf16.mxu0 0
        %756 = vmatpush1.bf16.xpose.msra.mxu0 0
        %757 = vmatprep.subr.bf16.mxu0 0
        %758 = vmatpush1.bf16.xpose.msra.mxu0 0
        %759 = vmatprep.subr.bf16.mxu0 0
        %760 = vmatpush1.bf16.xpose.msra.mxu0 0
        %761 = vmatprep.subr.bf16.mxu0 0
        %762 = vmatpush1.bf16.xpose.msra.mxu0 0
        %763 = vmatprep.subr.bf16.mxu0 0
        %764 = vmatpush1.bf16.xpose.msra.mxu0 0
        %765 = vmatprep.subr.bf16.mxu0 0
        %766 = vmatpush1.bf16.xpose.msra.mxu0 0
        %767 = vmatprep.subr.bf16.mxu0 0
        %768 = vmatpush1.bf16.xpose.msra.mxu0 0
        %769 = vmatprep.subr.bf16.mxu0 0
        %770 = vmatpush1.bf16.xpose.msra.mxu0 0
        %771 = vmatprep.mubr.bf16.mxu0 0
        %772 = vmatmul.mubr.bf16.gmra.mrb[0].mxu0 %v713
        %v773 = vpop.f32.mrb[0].mxu0
        %v774 = vadd.f32 %v710, %v773
        %v775 = vpop.f32.mrb[0].mxu0
        %v776 = vpop.f32.mrb[0].mxu0
        %v777 = vpop.f32.mrb[0].mxu0
        %778 = vdwg.mxu0
        %779 = vst [vmem:[%s285] sm:$0x1] %v774
        %s780 = sand.u32 %s183, 1
        %s781 = scalar_lea.sflag [#allocation4], %s780
        %s782 = sand.u32 %s183, 1
        %s783 = scalar_lea.vmem [#allocation3], %s782
        // Predicated region
        $region49: #{tpu_custom_call.1} parent=47 // pred_check
          %p784 = pneg %p193
        $region50: #{tpu_custom_call.1} parent=47 // pred_check_branch
          %786 = sbr.rel (%p784) target = $region52
        $region51: #{tpu_custom_call.1} parent=47 // pred_region
          %s788 = ssub.s32 16, 16
          %789 = vsyncadd %s781, %s788
          %s790 = smul.addr %s23, 16
          %s791 = scalar_lea.hbm %s7, %s790
          %s793 = sshll.u32 %s783, 4
          %s794 = int_to_ptr.vmem [resolvable:$true] %s793
          %796 = dma.vmem_to_hbm [thread:$0]  %s794, 16, %s791, %s781
        $region52: #{tpu_custom_call.1} parent=47 // pred_fallthru
          _
      $region48: #{tpu_custom_call.1} parent=5 // pred_fallthru
        _
      %p797 = scmp.le.s32.totalorder 2, %s18
      // Predicated region
      $region53: #{tpu_custom_call.1} parent=5 // pred_check
        %p798 = pneg %p797
      $region54: #{tpu_custom_call.1} parent=5 // pred_check_branch
        %800 = sbr.rel (%p798) target = $region56
      $region55: #{tpu_custom_call.1} parent=5 // pred_region
        %s801 = ssub.s32 %s18, 2
        // Predicated region
        $region57: #{tpu_custom_call.1} parent=55 // pred_check
          %p802 = pneg %p199
        $region58: #{tpu_custom_call.1} parent=55 // pred_check_branch
          %804 = sbr.rel (%p802) target = $region60
        $region59: #{tpu_custom_call.1} parent=55 // pred_region
          %s805 = sand.u32 %s184, 1
          %s806 = scalar_lea.sflag [#allocation4], %s805
          %s807 = sand.u32 %s184, 1
          %s808 = scalar_lea.vmem [#allocation3], %s807
          %809 = dma.done %s806, 16
        $region60: #{tpu_custom_call.1} parent=55 // pred_fallthru
          _
      $region56: #{tpu_custom_call.1} parent=5 // pred_fallthru
        _
    $region6: #{tpu_custom_call.1} parent=1 // loop_footer
      %s22 = sadd.s32 1, %s18
    $region7: #{tpu_custom_call.1} parent=1 // loop_footer_branch
      %17 = sbr.rel target = $region3
    $region8: #{tpu_custom_call.1} parent=1 // loop_exit
      _
    %810 = vsyncpa [#allocation4], 1
    %s811 = scalar_lea.sflag [#allocation4], 1
    %812 = vsyncpa %s811, 1

</llo_original>
